<compile_context>
chip_gen: v5e
topology: v5e:2x2
jax: 0.10.0
libtpu: 0.0.40
codegen_flags: <defaults>
</compile_context>

<pallas_src>
import functools

import jax
import jax.numpy as jnp
from jax.experimental import pallas as pl
from jax.experimental.pallas import tpu as pltpu


def residual_dwconv_bn_kernel(x_ref, w_ref, shift_ref, o_ref, *, H, W):
    """out = x + BN(dwconv3x3(x)) on a lane-flattened (c_blk, H*W) block.

    x_ref:     (1, c_blk, H*W)  input block (also provides the residual)
    w_ref:     (c_blk, 9)       depthwise taps (index kh*3+kw), BN scale folded (f32)
    shift_ref: (c_blk, 1)       fused BN shift = beta - mean * scale (f32)
    o_ref:     (1, c_blk, H*W)
    """
    c_blk = x_ref.shape[1]
    HW = H * W

    x = x_ref[0]              # (c_blk, HW), input dtype (no eager upcast)
    w = w_ref[...]            # (c_blk, 9), f32
    shift = shift_ref[...]    # (c_blk, 1), f32

    # Column-validity masks, computed ONCE per grid step and reused by all taps.
    lane = jax.lax.broadcasted_iota(jnp.int32, (c_blk, HW), 1)
    col = lane % W
    m_col_l = col != 0          # valid output lanes for the w-1 tap
    m_col_r = col != (W - 1)    # valid output lanes for the w+1 tap

    # Column taps (dw = -1, 0, +1) via zero-fill lane shifts; the masks also
    # remove the row-wrap leakage of the flat +/-1 shift.
    zcol = jnp.zeros((c_blk, 1), x.dtype)
    x_l = jnp.where(m_col_l, jnp.concatenate([zcol, x[:, :HW - 1]], axis=1), 0)  # x[., w-1]
    x_r = jnp.where(m_col_r, jnp.concatenate([x[:, 1:], zcol], axis=1), 0)       # x[., w+1]

    def row_mix(k0):
        # Weighted sum of the 3 column taps of one kernel row; f32 accumulate,
        # weights are (c_blk, 1) sublane vectors broadcast along lanes.
        return (x_l * w[:, k0:k0 + 1]
                + x * w[:, k0 + 1:k0 + 2]
                + x_r * w[:, k0 + 2:k0 + 3])

    t_top = row_mix(0)   # kernel row kh=0 -> needs source row h-1
    t_mid = row_mix(3)   # kh=1 -> source row h
    t_bot = row_mix(6)   # kh=2 -> source row h+1

    # Residual + BN shift folded into the accumulator init (f32).
    acc = x + shift + t_mid

    # Row taps: shift whole rows by +/-W lanes; the zero block doubles as the
    # top/bottom edge mask, so no extra selects are needed.
    zrow = jnp.zeros((c_blk, W), jnp.float32)
    acc = acc + jnp.concatenate([zrow, t_top[:, :HW - W]], axis=1)   # t_top at h-1
    acc = acc + jnp.concatenate([t_bot[:, W:], zrow], axis=1)        # t_bot at h+1

    o_ref[0] = acc.astype(o_ref.dtype)


def _pick_c_blk(C, HW, itemsize, budget_bytes=2 * 1024 * 1024):
    # Block's second-to-last dim must be a multiple of 8 or equal to C.
    cands = [C] + [d for d in range(8, C, 8) if C % d == 0]
    fitting = [d for d in cands if d * HW * itemsize <= budget_bytes]
    return max(fitting) if fitting else min(cands)


def residual_dwconv_bn(x_nchw, w_oihw, gamma, beta, running_mean, running_var,
                       eps=1e-5, c_blk=None):
    """out = x + BN(depthwise_conv3x3(x)), matching PyTorch eval-mode forward."""
    N, C, H, W = x_nchw.shape
    assert w_oihw.shape == (C, 1, 3, 3), "depthwise conv weight expected (C,1,3,3)"
    HW = H * W

    # Fold the eval-mode BN scale into the depthwise weights (exact reassociation);
    # the per-channel BN shift stays a single add in the kernel.
    inv_std = jax.lax.rsqrt(running_var.astype(jnp.float32) + eps)
    scale = gamma.astype(jnp.float32) * inv_std                         # (C,)
    shift = beta.astype(jnp.float32) - running_mean.astype(jnp.float32) * scale
    w2d = (w_oihw[:, 0].astype(jnp.float32) * scale[:, None, None]).reshape(C, 9)
    shift2d = shift.reshape(C, 1)

    itemsize = jnp.dtype(x_nchw.dtype).itemsize
    if c_blk is None:
        c_blk = _pick_c_blk(C, HW, itemsize)
    assert C % c_blk == 0 and (c_blk == C or c_blk % 8 == 0)

    # Lane-dense layout: spatial plane flattened onto the lane axis (contiguous
    # reshape in the wrapper = no data movement; HBM traffic is 1 read + 1 write).
    x_flat = x_nchw.reshape(N, C, HW)

    block_bytes = c_blk * HW * itemsize
    vmem_limit = int(min(48 * 1024 * 1024, max(32 * 1024 * 1024, 8 * block_bytes)))

    kernel = functools.partial(residual_dwconv_bn_kernel, H=H, W=W)
    out_flat = pl.pallas_call(
        kernel,
        out_shape=jax.ShapeDtypeStruct((N, C, HW), x_nchw.dtype),
        grid=(N, C // c_blk),
        in_specs=[
            pl.BlockSpec((1, c_blk, HW), lambda n, c: (n, c, 0)),
            pl.BlockSpec((c_blk, 9), lambda n, c: (c, 0)),
            pl.BlockSpec((c_blk, 1), lambda n, c: (c, 0)),
        ],
        out_specs=pl.BlockSpec((1, c_blk, HW), lambda n, c: (n, c, 0)),
        compiler_params=pltpu.CompilerParams(
            dimension_semantics=("parallel", "parallel"),
            vmem_limit_bytes=vmem_limit),
    )(x_flat, w2d, shift2d)
    return out_flat.reshape(N, C, H, W)


def _reference(x_nchw, w_oihw, gamma, beta, running_mean, running_var, eps=1e-5):
    """Pure-JAX reference: x + BN(depthwise conv3x3(x)) (unfused)."""
    N, C, H, W = x_nchw.shape
    conv = jax.lax.conv_general_dilated(
        x_nchw, w_oihw,
        window_strides=(1, 1), padding=((1, 1), (1, 1)),
        dimension_numbers=("NCHW", "OIHW", "NCHW"),
        feature_group_count=C,
    )
    inv_std = 1.0 / jnp.sqrt(running_var + eps)
    scale = (gamma * inv_std).reshape(1, C, 1, 1)
    shift = (beta - running_mean * gamma * inv_std).reshape(1, C, 1, 1)
    return x_nchw + conv * scale + shift


if __name__ == "__main__":
    key = jax.random.PRNGKey(0)
    k_x, k_w, k_g, k_b, k_m, k_v = jax.random.split(key, 6)

    N, C, H, W = 2, 4, 16, 16
    x = jax.random.normal(k_x, (N, C, H, W), dtype=jnp.float32)

    # Conv2d_BN(C, C, ks=3, stride=1, pad=1, groups=C): conv weight (C,1,3,3), no bias.
    w = jax.random.normal(k_w, (C, 1, 3, 3), dtype=jnp.float32) * 0.1
    gamma = 1.0 + 0.1 * jax.random.normal(k_g, (C,), dtype=jnp.float32)
    beta = 0.1 * jax.random.normal(k_b, (C,), dtype=jnp.float32)
    running_mean = 0.1 * jax.random.normal(k_m, (C,), dtype=jnp.float32)
    running_var = 0.5 + jnp.abs(jax.random.normal(k_v, (C,), dtype=jnp.float32))

    out = residual_dwconv_bn(x, w, gamma, beta, running_mean, running_var)
    out = jax.block_until_ready(out)

    ref = _reference(x, w, gamma, beta, running_mean, running_var)
    assert out.shape == (N, C, H, W)
    assert jnp.allclose(out, ref, atol=1e-5, rtol=1e-5), "mismatch vs reference"

    print("KERNEL_OK")
</pallas_src>

<mosaic_0001>
module attributes {stable_mosaic.version = 11 : i64} {
  func.func @residual_dwconv_bn_kernel(%arg0: i32, %arg1: i32, %arg2: memref<1x4x256xf32, #tpu.memory_space<vmem>>, %arg3: memref<4x9xf32, #tpu.memory_space<vmem>>, %arg4: memref<4x1xf32, #tpu.memory_space<vmem>>, %arg5: memref<1x4x256xf32, #tpu.memory_space<vmem>>) attributes {dimension_semantics = [#tpu.dimension_semantics<parallel>, #tpu.dimension_semantics<parallel>], iteration_bounds = array<i64: 2, 1>, scalar_prefetch = 0 : i64, scratch_operands = 0 : i64, tpu.core_type = #tpu.core_type<tc>, window_params = [{transform_indices = @transform_0, window_bounds = array<i64: 1, 4, 256>}, {transform_indices = @transform_1, window_bounds = array<i64: 4, 9>}, {transform_indices = @transform_2, window_bounds = array<i64: 4, 1>}, {transform_indices = @transform_3, window_bounds = array<i64: 1, 4, 256>}]} {
    %c0 = arith.constant 0 : index
    %c0_0 = arith.constant 0 : index
    %c0_1 = arith.constant 0 : index
    %0 = vector.load %arg2[%c0, %c0_0, %c0_1] : memref<1x4x256xf32, #tpu.memory_space<vmem>>, vector<1x4x256xf32>
    %1 = vector.shape_cast %0 : vector<1x4x256xf32> to vector<4x256xf32>
    %c0_2 = arith.constant 0 : index
    %c0_3 = arith.constant 0 : index
    %2 = vector.load %arg3[%c0_2, %c0_3] : memref<4x9xf32, #tpu.memory_space<vmem>>, vector<4x9xf32>
    %c0_4 = arith.constant 0 : index
    %c0_5 = arith.constant 0 : index
    %3 = vector.load %arg4[%c0_4, %c0_5] : memref<4x1xf32, #tpu.memory_space<vmem>>, vector<4x1xf32>
    %4 = tpu.iota {dimensions = array<i32: 1>} : vector<4x256xi32>
    %c16_i32 = arith.constant 16 : i32
    %c0_i32 = arith.constant 0 : i32
    %5 = arith.cmpi eq, %c16_i32, %c0_i32 : i32
    %c1_i32 = arith.constant 1 : i32
    %6 = arith.select %5, %c1_i32, %c16_i32 : i32
    %7 = vector.broadcast %6 : i32 to vector<4x256xi32>
    %8 = arith.remsi %4, %7 : vector<4x256xi32>
    %c0_i32_6 = arith.constant 0 : i32
    %9 = vector.broadcast %c0_i32_6 : i32 to vector<4x256xi32>
    %10 = arith.cmpi ne, %8, %9 : vector<4x256xi32>
    %c0_i32_7 = arith.constant 0 : i32
    %11 = vector.broadcast %c0_i32_7 : i32 to vector<4x256xi32>
    %12 = arith.cmpi slt, %8, %11 : vector<4x256xi32>
    %c0_i32_8 = arith.constant 0 : i32
    %13 = arith.cmpi slt, %6, %c0_i32_8 : i32
    %14 = vector.broadcast %13 : i1 to vector<4x256xi1>
    %15 = vector.broadcast %14 : vector<4x256xi1> to vector<4x256xi1>
    %16 = arith.xori %12, %15 : vector<4x256xi1>
    %17 = arith.andi %16, %10 : vector<4x256xi1>
    %18 = vector.broadcast %6 : i32 to vector<4x256xi32>
    %19 = arith.addi %8, %18 : vector<4x256xi32>
    %20 = arith.select %17, %19, %8 : vector<4x256xi1>, vector<4x256xi32>
    %c0_i32_9 = arith.constant 0 : i32
    %21 = vector.broadcast %c0_i32_9 : i32 to vector<4x256xi32>
    %22 = arith.cmpi ne, %20, %21 : vector<4x256xi32>
    %c15_i32 = arith.constant 15 : i32
    %23 = vector.broadcast %c15_i32 : i32 to vector<4x256xi32>
    %24 = arith.cmpi ne, %20, %23 : vector<4x256xi32>
    %cst = arith.constant 0.000000e+00 : f32
    %25 = vector.broadcast %cst : f32 to vector<4x1xf32>
    %26 = vector.extract_strided_slice %1 {offsets = [0, 0], sizes = [4, 255], strides = [1, 1]} : vector<4x256xf32> to vector<4x255xf32>
    %27 = tpu.concatenate %25, %26 in 1 : vector<4x1xf32>, vector<4x255xf32> -> vector<4x256xf32>
    %c0_i32_10 = arith.constant 0 : i32
    %28 = arith.sitofp %c0_i32_10 : i32 to f32
    %29 = vector.broadcast %28 : f32 to vector<4x256xf32>
    %30 = arith.select %22, %27, %29 : vector<4x256xi1>, vector<4x256xf32>
    %31 = vector.extract_strided_slice %1 {offsets = [0, 1], sizes = [4, 255], strides = [1, 1]} : vector<4x256xf32> to vector<4x255xf32>
    %32 = tpu.concatenate %31, %25 in 1 : vector<4x255xf32>, vector<4x1xf32> -> vector<4x256xf32>
    %c0_i32_11 = arith.constant 0 : i32
    %33 = arith.sitofp %c0_i32_11 : i32 to f32
    %34 = vector.broadcast %33 : f32 to vector<4x256xf32>
    %35 = arith.select %24, %32, %34 : vector<4x256xi1>, vector<4x256xf32>
    %36 = vector.extract_strided_slice %2 {offsets = [0, 0], sizes = [4, 1], strides = [1, 1]} : vector<4x9xf32> to vector<4x1xf32>
    %37 = vector.broadcast %36 : vector<4x1xf32> to vector<4x256xf32>
    %38 = arith.mulf %30, %37 : vector<4x256xf32>
    %39 = vector.extract_strided_slice %2 {offsets = [0, 1], sizes = [4, 1], strides = [1, 1]} : vector<4x9xf32> to vector<4x1xf32>
    %40 = vector.broadcast %39 : vector<4x1xf32> to vector<4x256xf32>
    %41 = arith.mulf %1, %40 : vector<4x256xf32>
    %42 = arith.addf %38, %41 : vector<4x256xf32>
    %43 = vector.extract_strided_slice %2 {offsets = [0, 2], sizes = [4, 1], strides = [1, 1]} : vector<4x9xf32> to vector<4x1xf32>
    %44 = vector.broadcast %43 : vector<4x1xf32> to vector<4x256xf32>
    %45 = arith.mulf %35, %44 : vector<4x256xf32>
    %46 = arith.addf %42, %45 : vector<4x256xf32>
    %47 = vector.extract_strided_slice %2 {offsets = [0, 3], sizes = [4, 1], strides = [1, 1]} : vector<4x9xf32> to vector<4x1xf32>
    %48 = vector.broadcast %47 : vector<4x1xf32> to vector<4x256xf32>
    %49 = arith.mulf %30, %48 : vector<4x256xf32>
    %50 = vector.extract_strided_slice %2 {offsets = [0, 4], sizes = [4, 1], strides = [1, 1]} : vector<4x9xf32> to vector<4x1xf32>
    %51 = vector.broadcast %50 : vector<4x1xf32> to vector<4x256xf32>
    %52 = arith.mulf %1, %51 : vector<4x256xf32>
    %53 = arith.addf %49, %52 : vector<4x256xf32>
    %54 = vector.extract_strided_slice %2 {offsets = [0, 5], sizes = [4, 1], strides = [1, 1]} : vector<4x9xf32> to vector<4x1xf32>
    %55 = vector.broadcast %54 : vector<4x1xf32> to vector<4x256xf32>
    %56 = arith.mulf %35, %55 : vector<4x256xf32>
    %57 = arith.addf %53, %56 : vector<4x256xf32>
    %58 = vector.extract_strided_slice %2 {offsets = [0, 6], sizes = [4, 1], strides = [1, 1]} : vector<4x9xf32> to vector<4x1xf32>
    %59 = vector.broadcast %58 : vector<4x1xf32> to vector<4x256xf32>
    %60 = arith.mulf %30, %59 : vector<4x256xf32>
    %61 = vector.extract_strided_slice %2 {offsets = [0, 7], sizes = [4, 1], strides = [1, 1]} : vector<4x9xf32> to vector<4x1xf32>
    %62 = vector.broadcast %61 : vector<4x1xf32> to vector<4x256xf32>
    %63 = arith.mulf %1, %62 : vector<4x256xf32>
    %64 = arith.addf %60, %63 : vector<4x256xf32>
    %65 = vector.extract_strided_slice %2 {offsets = [0, 8], sizes = [4, 1], strides = [1, 1]} : vector<4x9xf32> to vector<4x1xf32>
    %66 = vector.broadcast %65 : vector<4x1xf32> to vector<4x256xf32>
    %67 = arith.mulf %35, %66 : vector<4x256xf32>
    %68 = arith.addf %64, %67 : vector<4x256xf32>
    %69 = vector.broadcast %3 : vector<4x1xf32> to vector<4x256xf32>
    %70 = arith.addf %1, %69 : vector<4x256xf32>
    %71 = arith.addf %70, %57 : vector<4x256xf32>
    %cst_12 = arith.constant 0.000000e+00 : f32
    %72 = vector.broadcast %cst_12 : f32 to vector<4x16xf32>
    %73 = vector.extract_strided_slice %46 {offsets = [0, 0], sizes = [4, 240], strides = [1, 1]} : vector<4x256xf32> to vector<4x240xf32>
    %74 = tpu.concatenate %72, %73 in 1 : vector<4x16xf32>, vector<4x240xf32> -> vector<4x256xf32>
    %75 = arith.addf %71, %74 : vector<4x256xf32>
    %76 = vector.extract_strided_slice %68 {offsets = [0, 16], sizes = [4, 240], strides = [1, 1]} : vector<4x256xf32> to vector<4x240xf32>
    %77 = tpu.concatenate %76, %72 in 1 : vector<4x240xf32>, vector<4x16xf32> -> vector<4x256xf32>
    %78 = arith.addf %75, %77 : vector<4x256xf32>
    %c0_13 = arith.constant 0 : index
    %c0_14 = arith.constant 0 : index
    %c0_15 = arith.constant 0 : index
    %79 = vector.load %arg5[%c0_13, %c0_14, %c0_15] : memref<1x4x256xf32, #tpu.memory_space<vmem>>, vector<1x4x256xf32>
    %80 = vector.shape_cast %79 : vector<1x4x256xf32> to vector<4x256xf32>
    %81 = vector.shape_cast %78 : vector<4x256xf32> to vector<1x4x256xf32>
    tpu.vector_store %arg5[%c0_13, %c0_14, %c0_15], %81 {strides = array<i32>} : memref<1x4x256xf32, #tpu.memory_space<vmem>>, vector<1x4x256xf32>,
    return
  }
  func.func @transform_0(%arg0: i32, %arg1: i32) -> (i32, i32, i32) {
    %c0_i32 = arith.constant 0 : i32
    %c0_i32_0 = arith.constant 0 : i32
    return %arg0, %arg1, %c0_i32 : i32, i32, i32
  }
  func.func @transform_1(%arg0: i32, %arg1: i32) -> (i32, i32) {
    %c0_i32 = arith.constant 0 : i32
    %c0_i32_0 = arith.constant 0 : i32
    return %arg1, %c0_i32 : i32, i32
  }
  func.func @transform_2(%arg0: i32, %arg1: i32) -> (i32, i32) {
    %c0_i32 = arith.constant 0 : i32
    %c0_i32_0 = arith.constant 0 : i32
    return %arg1, %c0_i32 : i32, i32
  }
  func.func @transform_3(%arg0: i32, %arg1: i32) -> (i32, i32, i32) {
    %c0_i32 = arith.constant 0 : i32
    %c0_i32_0 = arith.constant 0 : i32
    return %arg0, %arg1, %c0_i32 : i32, i32, i32
  }
}

</mosaic_0001>

<llo_original>
// kernel: tpu_custom_call.1
$region0: #{tpu_custom_call.1}
  #allocation0 [shape = 'u32[]', space=smem, size = 0x4, offset = 0x4, fixed_abs, tag = 'smem constant byte address 0x4 - core index']
  #allocation1 [shape = 'u32[72,128]{1,0:T(1,128)}', space=vmem, size = 0x9000, scoped, tag = 'internal scratch']
  %s0 = inlined_call_operand.hbm [shape: f32[2,4,256], index: 0, kind: input, shape index: {}]
  %s1 = inlined_call_operand.vmem [shape: f32[4,9], index: 1, kind: input, shape index: {}]
  %s2 = inlined_call_operand.vmem [shape: f32[4,1], index: 2, kind: input, shape index: {}]
  %s3 = inlined_call_operand.hbm [shape: f32[2,4,256], index: 3, kind: output, shape index: {}]
  %s4 = sld [smem:[#allocation0]]
  $region49: #{tpu_custom_call.1} parent=0
    _
  %s6 = ssub.s32 1, %s4
  %s7 = scalar_select 0, %s6, %s4
  $region1: #{tpu_custom_call.1} parent=0
    #allocation2 [shape = 'u8[8192]{0}', space=vmem, size = 0x2000, scoped, tag = 'input window, operand 0']
    #allocation3 [shape = 's32[2]{0}', space=sflag, size = 0x8, scoped, tag = 'scoped memory for tpu_custom_call.1']
    #allocation4 [shape = 's32[2]{0}', space=sflag, size = 0x8, scoped, tag = 'scoped memory for tpu_custom_call.1']
    #allocation5 [shape = 'u8[8192]{0}', space=vmem, size = 0x2000, scoped, tag = 'output window, operand 0']
    %8 = vsyncpa [#allocation3], 0
    %s9 = scalar_lea.sflag [#allocation3], 1
    %10 = vsyncpa %s9, 0
    %11 = vsyncpa [#allocation4], 0
    %s12 = scalar_lea.sflag [#allocation4], 1
    %13 = vsyncpa %s12, 0
    loop: start=0, step=1, limit=4
    $region2: #{tpu_custom_call.1} parent=1 // loop_pre_header
      _
    $region3: #{tpu_custom_call.1} parent=1 // loop_header
      %s15 = sphi 0, %s19
      %p16 = scmp.ge.s32.totalorder %s15, 4
      %s22 = sphi 0, %s34
      %s23 = sphi 0, %s30
      %s24 = sphi 0, %s22
      %s25 = sphi 0, %s23
      %s26 = sphi 0, %s24
      %s27 = sphi 0, %s25
      %s39 = sphi 0, %s41
      %s42 = sphi 0, %s39
      %s43 = sphi 0, %s42
      %s59 = sphi 0, %s43
      %s65 = sphi 0, %s67
      %s68 = sphi 0, %s65
      %s69 = sphi 0, %s68
      %s85 = sphi 0, %s69
      %s91 = sphi 0, %s93
      %s94 = sphi 0, %s91
      %s95 = sphi 0, %s94
      %s111 = sphi 0, %s95
      %s119 = sphi 0, %s121
      %s122 = sphi 0, %s119
      %s123 = sphi 0, %s122
      %s139 = sphi 0, %s123
    $region4: #{tpu_custom_call.1} parent=1 // loop_header_branch
      %18 = sbr.rel (%p16) target = $region8
    $region5: #{tpu_custom_call.1} parent=1 // loop_body
      %s20 = ssub.s32 %s15, 1
      %s21 = ssub.s32 %s15, 2
      %s28 = sadd.s32 1, %s23
      %p29 = scmp.ge.s32.totalorder %s28, 1
      %s30 = scalar_select %p29, 0, %s28
      %s31 = sadd.s32 1, %s22
      %s32 = scalar_select %p29, %s31, %s22
      %p33 = scmp.ge.s32.totalorder %s32, 2
      %s34 = scalar_select %p33, 0, %s32
      %s35 = ssub.s32 %s22, %s34
      %s36 = ssub.s32 %s23, %s30
      %s37 = sor.u32 %s35, %s36
      %p38 = scmp.eq.s32.totalorder %s37, 0
      %s40 = sadd.s32 %s39, 1
      %s41 = scalar_select %p38, %s39, %s40
      %p44 = pneg %p38
      %p45 = scmp.eq.s32.totalorder %s15, 1
      %p46 = por %p44, %p45
      %p47 = scmp.ne.s32.totalorder %s39, %s42
      %p48 = scmp.eq.s32.totalorder %s15, 0
      %p49 = por %p47, %p48
      %p50 = scmp.ne.s32.totalorder %s39, %s42
      %p51 = scmp.eq.s32.totalorder %s20, 1
      %p52 = por %p50, %p51
      %p53 = scmp.ne.s32.totalorder %s42, %s43
      %p54 = scmp.eq.s32.totalorder %s20, 0
      %p55 = por %p53, %p54
      %p56 = scmp.ne.s32.totalorder %s42, %s43
      %p57 = scmp.eq.s32.totalorder %s21, 1
      %p58 = por %p56, %p57
      %p60 = scmp.ne.s32.totalorder %s43, %s59
      %p61 = scmp.eq.s32.totalorder %s21, 0
      %p62 = por %p60, %p61
      %s63 = ssub.s32 %s23, %s30
      %p64 = scmp.eq.s32.totalorder %s63, 0
      %s66 = sadd.s32 %s65, 1
      %s67 = scalar_select %p64, %s65, %s66
      %p70 = pneg %p64
      %p71 = scmp.eq.s32.totalorder %s15, 1
      %p72 = por %p70, %p71
      %p73 = scmp.ne.s32.totalorder %s65, %s68
      %p74 = scmp.eq.s32.totalorder %s15, 0
      %p75 = por %p73, %p74
      %p76 = scmp.ne.s32.totalorder %s65, %s68
      %p77 = scmp.eq.s32.totalorder %s20, 1
      %p78 = por %p76, %p77
      %p79 = scmp.ne.s32.totalorder %s68, %s69
      %p80 = scmp.eq.s32.totalorder %s20, 0
      %p81 = por %p79, %p80
      %p82 = scmp.ne.s32.totalorder %s68, %s69
      %p83 = scmp.eq.s32.totalorder %s21, 1
      %p84 = por %p82, %p83
      %p86 = scmp.ne.s32.totalorder %s69, %s85
      %p87 = scmp.eq.s32.totalorder %s21, 0
      %p88 = por %p86, %p87
      %s89 = ssub.s32 %s23, %s30
      %p90 = scmp.eq.s32.totalorder %s89, 0
      %s92 = sadd.s32 %s91, 1
      %s93 = scalar_select %p90, %s91, %s92
      %p96 = pneg %p90
      %p97 = scmp.eq.s32.totalorder %s15, 1
      %p98 = por %p96, %p97
      %p99 = scmp.ne.s32.totalorder %s91, %s94
      %p100 = scmp.eq.s32.totalorder %s15, 0
      %p101 = por %p99, %p100
      %p102 = scmp.ne.s32.totalorder %s91, %s94
      %p103 = scmp.eq.s32.totalorder %s20, 1
      %p104 = por %p102, %p103
      %p105 = scmp.ne.s32.totalorder %s94, %s95
      %p106 = scmp.eq.s32.totalorder %s20, 0
      %p107 = por %p105, %p106
      %p108 = scmp.ne.s32.totalorder %s94, %s95
      %p109 = scmp.eq.s32.totalorder %s21, 1
      %p110 = por %p108, %p109
      %p112 = scmp.ne.s32.totalorder %s95, %s111
      %p113 = scmp.eq.s32.totalorder %s21, 0
      %p114 = por %p112, %p113
      %s115 = ssub.s32 %s22, %s34
      %s116 = ssub.s32 %s23, %s30
      %s117 = sor.u32 %s115, %s116
      %p118 = scmp.eq.s32.totalorder %s117, 0
      %s120 = sadd.s32 %s119, 1
      %s121 = scalar_select %p118, %s119, %s120
      %p124 = pneg %p118
      %p125 = scmp.eq.s32.totalorder %s15, 1
      %p126 = por %p124, %p125
      %p127 = scmp.ne.s32.totalorder %s119, %s122
      %p128 = scmp.eq.s32.totalorder %s15, 0
      %p129 = por %p127, %p128
      %p130 = scmp.ne.s32.totalorder %s119, %s122
      %p131 = scmp.eq.s32.totalorder %s20, 1
      %p132 = por %p130, %p131
      %p133 = scmp.ne.s32.totalorder %s122, %s123
      %p134 = scmp.eq.s32.totalorder %s20, 0
      %p135 = por %p133, %p134
      %p136 = scmp.ne.s32.totalorder %s122, %s123
      %p137 = scmp.eq.s32.totalorder %s21, 1
      %p138 = por %p136, %p137
      %p140 = scmp.ne.s32.totalorder %s123, %s139
      %p141 = scmp.eq.s32.totalorder %s21, 0
      %p142 = por %p140, %p141
      %p143 = scmp.le.s32.totalorder 1, %s15
      %p144 = scmp.lt.s32.totalorder %s15, 3
      %p145 = pnand %p143, %p144
      %p146 = pneg %p145
      // Predicated region
      $region9: #{tpu_custom_call.1} parent=5 // pred_check
        _
      $region10: #{tpu_custom_call.1} parent=5 // pred_check_branch
        %148 = sbr.rel (%p145) target = $region12
      $region11: #{tpu_custom_call.1} parent=5 // pred_region
        %s149 = ssub.s32 %s15, 1
        // Predicated region
        $region13: #{tpu_custom_call.1} parent=11 // pred_check
          %p150 = pneg %p81
        $region14: #{tpu_custom_call.1} parent=11 // pred_check_branch
          %152 = sbr.rel (%p150) target = $region16
        $region15: #{tpu_custom_call.1} parent=11 // pred_region
          %p153 = scmp.lt.s32.totalorder %s25, 0
          %s154 = scalar_select %p153, %s25, 0
          %s155 = smul.addr %s154, 4
          %s156 = scalar_lea.vmem %s1, %s155
        $region16: #{tpu_custom_call.1} parent=11 // pred_fallthru
          _
        // Predicated region
        $region17: #{tpu_custom_call.1} parent=11 // pred_check
          %p157 = pneg %p107
        $region18: #{tpu_custom_call.1} parent=11 // pred_check_branch
          %159 = sbr.rel (%p157) target = $region20
        $region19: #{tpu_custom_call.1} parent=11 // pred_region
          %p160 = scmp.lt.s32.totalorder %s25, 0
          %s161 = scalar_select %p160, %s25, 0
          %s162 = smul.addr %s161, 4
          %s163 = scalar_lea.vmem %s2, %s162
        $region20: #{tpu_custom_call.1} parent=11 // pred_fallthru
          _
      $region12: #{tpu_custom_call.1} parent=5 // pred_fallthru
        _
      %p164 = scmp.lt.s32.totalorder %s15, 2
      // Predicated region
      $region21: #{tpu_custom_call.1} parent=5 // pred_check
        %p165 = pneg %p164
      $region22: #{tpu_custom_call.1} parent=5 // pred_check_branch
        %167 = sbr.rel (%p165) target = $region24
      $region23: #{tpu_custom_call.1} parent=5 // pred_region
        // Predicated region
        $region25: #{tpu_custom_call.1} parent=23 // pred_check
          %p168 = pneg %p49
        $region26: #{tpu_custom_call.1} parent=23 // pred_check_branch
          %170 = sbr.rel (%p168) target = $region28
        $region27: #{tpu_custom_call.1} parent=23 // pred_region
          %s171 = sand.u32 %s39, 1
          %s172 = scalar_lea.sflag [#allocation3], %s171
          %s173 = sand.u32 %s39, 1
          %s174 = smul.addr %s173, 8
          %s175 = scalar_lea.vmem [#allocation2], %s174
          %177 = vsyncadd %s172, 0
          %s178 = smul.addr %s23, 2
          %s179 = smul.addr %s22, 2
          %s180 = sadd.s32 %s178, %s179
          %s181 = smul.addr %s180, 4
          %s182 = scalar_lea.hbm %s0, %s181
          %s184 = sshll.u32 %s182, 4
          %s185 = int_to_ptr.hbm [resolvable:$true] %s184
          %s186 = sshll.u32 %s175, 4
          %s187 = int_to_ptr.vmem [resolvable:$true] %s186
          %189 = dma.hbm_to_vmem [thread:$0]  %s185, 128, %s187, %s172
        $region28: #{tpu_custom_call.1} parent=23 // pred_fallthru
          _
      $region24: #{tpu_custom_call.1} parent=5 // pred_fallthru
        _
      %p190 = scmp.le.s32.totalorder 1, %s15
      %p191 = scmp.lt.s32.totalorder %s15, 3
      %p192 = pnand %p190, %p191
      %p193 = pneg %p192
      // Predicated region
      $region29: #{tpu_custom_call.1} parent=5 // pred_check
        _
      $region30: #{tpu_custom_call.1} parent=5 // pred_check_branch
        %195 = sbr.rel (%p192) target = $region32
      $region31: #{tpu_custom_call.1} parent=5 // pred_region
        %s196 = ssub.s32 %s15, 1
        %s197 = sand.u32 %s42, 1
        %s198 = scalar_lea.sflag [#allocation3], %s197
        %s199 = sand.u32 %s42, 1
        %s200 = smul.addr %s199, 8
        %s201 = scalar_lea.vmem [#allocation2], %s200
        // Predicated region
        $region33: #{tpu_custom_call.1} parent=31 // pred_check
          %p202 = pneg %p55
        $region34: #{tpu_custom_call.1} parent=31 // pred_check_branch
          %204 = sbr.rel (%p202) target = $region36
        $region35: #{tpu_custom_call.1} parent=31 // pred_region
          %206 = dma.done %s198, 128
        $region36: #{tpu_custom_call.1} parent=31 // pred_fallthru
          _
        %s207 = sand.u32 %s42, 1
        %s208 = scalar_lea.sflag [#allocation3], %s207
        %s209 = sand.u32 %s42, 1
        %s210 = smul.addr %s209, 8
        %s211 = scalar_lea.vmem [#allocation2], %s210
        %p212 = pneg %p55
        %p213 = pneg %p52
        %p214 = scmp.lt.s32.totalorder %s25, 0
        %s215 = scalar_select %p214, %s25, 0
        %s216 = smul.addr %s215, 4
        %s217 = scalar_lea.vmem %s1, %s216
        %p218 = pneg %p81
        %p219 = pneg %p78
        %p220 = scmp.lt.s32.totalorder %s25, 0
        %s221 = scalar_select %p220, %s25, 0
        %s222 = smul.addr %s221, 4
        %s223 = scalar_lea.vmem %s2, %s222
        %p224 = pneg %p107
        %p225 = pneg %p104
        %p226 = pneg %p135
        %p227 = pneg %p132
        %s228 = sand.u32 %s122, 1
        %s229 = scalar_lea.sflag [#allocation4], %s228
        %s230 = sand.u32 %s122, 1
        %s231 = smul.addr %s230, 8
        %s232 = scalar_lea.vmem [#allocation5], %s231
        %p233 = scmp.lt.s32.totalorder %s25, 0
        %s234 = scalar_select %p233, %s25, 0
        %s235 = smul.addr %s234, 4
        %s236 = scalar_lea.vmem %s1, %s235
        %p237 = scmp.lt.s32.totalorder %s25, 0
        %s238 = scalar_select %p237, %s25, 0
        %s239 = smul.addr %s238, 4
        %s240 = scalar_lea.vmem %s2, %s239
        %v241 = vld [vmem:[%s201] sm:$0xff]
        %v242 = vld [vmem:[%s236] sm:$0xf]
        %v243 = vld [vmem:[%s240] sm:$0xf]
        %v244 = vlaneseq
        %v245 = vand.u32 %v244, 127
        %v246 = vadd.s32 %v245, 128
        %vm247 = vcmp.lt.s32.totalorder %v245, 0
        %v248 = vsub.s32 0, %v245
        %v249 = vsel %vm247, %v248, %v245
        %v250 = vshrl.u32 %v249, 4
        %v251 = vand.u32 %v249, 15
        %v252 = vsub.s32 0, %v251
        %v253 = vsel %vm247, %v252, %v251
        %vm254 = vcmp.lt.s32.totalorder %v246, 0
        %v255 = vsub.s32 0, %v246
        %v256 = vsel %vm254, %v255, %v246
        %v257 = vshrl.u32 %v256, 4
        %v258 = vand.u32 %v256, 15
        %v259 = vsub.s32 0, %v258
        %v260 = vsel %vm254, %v259, %v258
        %vm261 = vcmp.ne.s32.totalorder %v253, 0
        %vm262 = vcmp.ne.s32.totalorder %v260, 0
        %vm263 = vcmp.lt.s32.totalorder %v253, 0
        %vm264 = vcmp.lt.s32.totalorder %v260, 0
        %vm265 = vmand %vm263, %vm261
        %vm266 = vmand %vm264, %vm262
        %v267 = vadd.s32 %v253, 16
        %v268 = vadd.s32 %v260, 16
        %v269 = vsel %vm265, %v267, %v253
        %v270 = vsel %vm266, %v268, %v260
        %vm271 = vcmp.ne.s32.totalorder %v269, 0
        %vm272 = vcmp.ne.s32.totalorder %v270, 0
        %vm273 = vcmp.ne.s32.totalorder %v269, 15
        %vm274 = vcmp.ne.s32.totalorder %v270, 15
        %276 = vst [vmem:[#allocation1] ss:$2 sm:$0xff] %v241
        %v277 = vld.sshfl [vmem:[#allocation1] sm:$0xff pattern:$0x75316420]
        %v278 = vld.sshfl [vmem:[#allocation1 + $0x8] sm:$0xff pattern:$0x75316420]
        %279 = vrot.lane.b32.xlu0 %v277, 1
        %v280 = vpop.permute.xlu0 %279
        %281 = vrot.lane.b32.xlu0 %v278, 1
        %v282 = vpop.permute.xlu0 %281
        %vm283 = vcmask 7168
        %v284 = vsel %vm283, %v280, %v282
        %v287 = vsel %vm283, 0.0, %v280
        %v288 = vsel %vm271, %v287, 0.0
        %v289 = vsel %vm272, %v284, 0.0
        %290 = vst [vmem:[#allocation1] ss:$2 sm:$0xff] %v241
        %v291 = vld.sshfl [vmem:[#allocation1] sm:$0xff pattern:$0x75316420]
        %v292 = vld.sshfl [vmem:[#allocation1 + $0x8] sm:$0xff pattern:$0x75316420]
        %293 = vrot.lane.b32.xlu0 %v291, 127
        %v294 = vpop.permute.xlu0 %293
        %295 = vrot.lane.b32.xlu0 %v292, 127
        %v296 = vpop.permute.xlu0 %295
        %vm297 = vcmask 1039360
        %v298 = vsel %vm297, %v294, %v296
        %v301 = vsel %vm297, %v296, 0.0
        %v302 = vsel %vm273, %v298, 0.0
        %v303 = vsel %vm274, %v301, 0.0
        %305 = vset.pattern.permute.xlu0 0
        %306 = vperm.xlu0 %305, %v242
        %v307 = vpop.permute.xlu0 %306
        %v309 = vmul.f32 %v288, %v307
        %v310 = vmul.f32 %v289, %v307
        %311 = vset.pattern.permute.xlu0 1
        %312 = vperm.xlu0 %311, %v242
        %v313 = vpop.permute.xlu0 %312
        %v315 = vunpack.c.l.s4 839922192
        %v316 = vunpack.c.0.s8 %v315
        %v317 = vperm.slane %v313, %v316
        %v319 = vmul.f32 %v241, %v317
        %321 = vst [vmem:[#allocation1] ss:$2 sm:$0xff] %v319
        %v322 = vld.sshfl [vmem:[#allocation1] sm:$0xff pattern:$0x75316420]
        %v323 = vld.sshfl [vmem:[#allocation1 + $0x8] sm:$0xff pattern:$0x75316420]
        %v326 = vadd.f32 %v309, %v322
        %v327 = vadd.f32 %v310, %v323
        %328 = vset.pattern.permute.xlu0 2
        %329 = vperm.xlu0 %328, %v242
        %v330 = vpop.permute.xlu0 %329
        %v332 = vmul.f32 %v302, %v330
        %v333 = vmul.f32 %v303, %v330
        %v334 = vadd.f32 %v326, %v332
        %v335 = vadd.f32 %v327, %v333
        %336 = vset.pattern.permute.xlu0 3
        %337 = vperm.xlu0 %336, %v242
        %v338 = vpop.permute.xlu0 %337
        %v340 = vmul.f32 %v288, %v338
        %v341 = vmul.f32 %v289, %v338
        %342 = vset.pattern.permute.xlu0 4
        %343 = vperm.xlu0 %342, %v242
        %v344 = vpop.permute.xlu0 %343
        %v346 = vunpack.c.l.s4 839922192
        %v347 = vunpack.c.0.s8 %v346
        %v348 = vperm.slane %v344, %v347
        %v350 = vmul.f32 %v241, %v348
        %352 = vst [vmem:[#allocation1] ss:$2 sm:$0xff] %v350
        %v353 = vld.sshfl [vmem:[#allocation1] sm:$0xff pattern:$0x75316420]
        %v354 = vld.sshfl [vmem:[#allocation1 + $0x8] sm:$0xff pattern:$0x75316420]
        %v357 = vadd.f32 %v340, %v353
        %v358 = vadd.f32 %v341, %v354
        %359 = vset.pattern.permute.xlu0 5
        %360 = vperm.xlu0 %359, %v242
        %v361 = vpop.permute.xlu0 %360
        %v363 = vmul.f32 %v302, %v361
        %v364 = vmul.f32 %v303, %v361
        %v365 = vadd.f32 %v357, %v363
        %v366 = vadd.f32 %v358, %v364
        %367 = vset.pattern.permute.xlu0 6
        %368 = vperm.xlu0 %367, %v242
        %v369 = vpop.permute.xlu0 %368
        %v371 = vmul.f32 %v288, %v369
        %v372 = vmul.f32 %v289, %v369
        %373 = vset.pattern.permute.xlu0 7
        %374 = vperm.xlu0 %373, %v242
        %v375 = vpop.permute.xlu0 %374
        %v377 = vunpack.c.l.s4 839922192
        %v378 = vunpack.c.0.s8 %v377
        %v379 = vperm.slane %v375, %v378
        %v381 = vmul.f32 %v241, %v379
        %383 = vst [vmem:[#allocation1] ss:$2 sm:$0xff] %v381
        %v384 = vld.sshfl [vmem:[#allocation1] sm:$0xff pattern:$0x75316420]
        %v385 = vld.sshfl [vmem:[#allocation1 + $0x8] sm:$0xff pattern:$0x75316420]
        %v388 = vadd.f32 %v371, %v384
        %v389 = vadd.f32 %v372, %v385
        %390 = vset.pattern.permute.xlu0 8
        %391 = vperm.xlu0 %390, %v242
        %v392 = vpop.permute.xlu0 %391
        %v394 = vmul.f32 %v302, %v392
        %v395 = vmul.f32 %v303, %v392
        %v396 = vadd.f32 %v388, %v394
        %v397 = vadd.f32 %v389, %v395
        %399 = vset.pattern.permute.xlu0 0
        %400 = vperm.xlu0 %399, %v243
        %v401 = vpop.permute.xlu0 %400
        %v403 = vunpack.c.l.s4 839922192
        %v404 = vunpack.c.0.s8 %v403
        %v405 = vperm.slane %v401, %v404
        %v407 = vadd.f32 %v241, %v405
        %v410 = vrot.slane %v366, 4
        %vm411 = vcmask 1043456
        %v412 = vsel %vm411, %v365, %v410
        %v414 = vadd.f32 %v407, %v412
        %417 = vrot.lane.b32.xlu0 %v334, 16
        %v418 = vpop.permute.xlu0 %417
        %419 = vrot.lane.b32.xlu0 %v335, 16
        %v420 = vpop.permute.xlu0 %419
        %vm421 = vcmask 130048
        %v422 = vsel %vm421, %v418, %v420
        %v424 = vsel %vm421, 0.0, %v418
        %v426 = vrot.slane %v422, 4
        %v427 = vsel %vm411, %v424, %v426
        %v429 = vadd.f32 %v414, %v427
        %432 = vrot.lane.b32.xlu0 %v396, 112
        %v433 = vpop.permute.xlu0 %432
        %434 = vrot.lane.b32.xlu0 %v397, 112
        %v435 = vpop.permute.xlu0 %434
        %vm436 = vcmask 916480
        %v437 = vsel %vm436, %v433, %v435
        %v439 = vsel %vm436, %v435, 0.0
        %v441 = vrot.slane %v439, 4
        %v442 = vsel %vm411, %v437, %v441
        %v444 = vadd.f32 %v429, %v442
        %445 = vst [vmem:[%s232] sm:$0xff] %v444
        %s446 = sand.u32 %s122, 1
        %s447 = scalar_lea.sflag [#allocation4], %s446
        %s448 = sand.u32 %s122, 1
        %s449 = smul.addr %s448, 8
        %s450 = scalar_lea.vmem [#allocation5], %s449
        // Predicated region
        $region37: #{tpu_custom_call.1} parent=31 // pred_check
          %p451 = pneg %p132
        $region38: #{tpu_custom_call.1} parent=31 // pred_check_branch
          %453 = sbr.rel (%p451) target = $region40
        $region39: #{tpu_custom_call.1} parent=31 // pred_region
          %455 = vsyncadd %s447, 0
          %s456 = smul.addr %s25, 2
          %s457 = smul.addr %s24, 2
          %s458 = sadd.s32 %s456, %s457
          %s459 = smul.addr %s458, 4
          %s460 = scalar_lea.hbm %s3, %s459
          %s462 = sshll.u32 %s450, 4
          %s463 = int_to_ptr.vmem [resolvable:$true] %s462
          %s464 = sshll.u32 %s460, 4
          %s465 = int_to_ptr.hbm [resolvable:$true] %s464
          %467 = dma.vmem_to_hbm [thread:$0]  %s463, 128, %s465, %s447
        $region40: #{tpu_custom_call.1} parent=31 // pred_fallthru
          _
      $region32: #{tpu_custom_call.1} parent=5 // pred_fallthru
        _
      %p468 = scmp.le.s32.totalorder 2, %s15
      // Predicated region
      $region41: #{tpu_custom_call.1} parent=5 // pred_check
        %p469 = pneg %p468
      $region42: #{tpu_custom_call.1} parent=5 // pred_check_branch
        %471 = sbr.rel (%p469) target = $region44
      $region43: #{tpu_custom_call.1} parent=5 // pred_region
        %s472 = ssub.s32 %s15, 2
        // Predicated region
        $region45: #{tpu_custom_call.1} parent=43 // pred_check
          %p473 = pneg %p138
        $region46: #{tpu_custom_call.1} parent=43 // pred_check_branch
          %475 = sbr.rel (%p473) target = $region48
        $region47: #{tpu_custom_call.1} parent=43 // pred_region
          %s476 = sand.u32 %s123, 1
          %s477 = scalar_lea.sflag [#allocation4], %s476
          %s478 = sand.u32 %s123, 1
          %s479 = smul.addr %s478, 8
          %s480 = scalar_lea.vmem [#allocation5], %s479
          %482 = dma.done %s477, 128
        $region48: #{tpu_custom_call.1} parent=43 // pred_fallthru
          _
      $region44: #{tpu_custom_call.1} parent=5 // pred_fallthru
        _
    $region6: #{tpu_custom_call.1} parent=1 // loop_footer
      %s19 = sadd.s32 1, %s15
    $region7: #{tpu_custom_call.1} parent=1 // loop_footer_branch
      %14 = sbr.rel target = $region3
    $region8: #{tpu_custom_call.1} parent=1 // loop_exit
      _
    %483 = vsyncpa [#allocation3], 1
    %s484 = scalar_lea.sflag [#allocation3], 1
    %485 = vsyncpa %s484, 1
    %486 = vsyncpa [#allocation4], 1
    %s487 = scalar_lea.sflag [#allocation4], 1
    %488 = vsyncpa %s487, 1

</llo_original>
